<compile_context>
chip_gen: v7x
topology: tpu7x:2x2x1
jax: 0.10.0
libtpu: 0.0.40
codegen_flags: <defaults>
</compile_context>

<pallas_src>
import functools

import jax
import jax.numpy as jnp
from jax import lax
from jax.experimental import pallas as pl
from jax.experimental.pallas import tpu as pltpu

LANE = 128
SUBLANE = 8
MAX_BLOCK_ROWS = 8192      # (8192, 128) f32 = 4 MiB per input block
CHUNK_ROWS = 1024          # in-kernel compute chunk -> ~0.5 MiB intermediates
VMEM_LIMIT_BYTES = 40 << 20


def _num_cores_for_split():
    """2-way row split only pays on multi-TensorCore chips (v7x)."""
    try:
        kind = jax.devices()[0].device_kind.lower()
    except Exception:
        return 1
    if "v7" in kind or "7x" in kind:
        # TODO(synk): confirm in xprof that "parallel" shards across both v7x
        # TensorCores; if not, switch the leading axis to pltpu.CORE_PARALLEL.
        return 2
    return 1


def _dice_partial_kernel(x_ref, t_ref, st_ref, spt_ref, *,
                         rows, block_rows, chunk_rows, steps_per_core,
                         n_blocks):
    c = pl.program_id(0)            # "parallel" core axis
    j = pl.program_id(1)            # "arbitrary" reduction axis

    @pl.when(j == 0)
    def _init():
        st_ref[...] = jnp.zeros_like(st_ref)
        spt_ref[...] = jnp.zeros_like(spt_ref)

    block_idx = c * steps_per_core + j
    row_base = block_idx * block_rows          # first global row of this block
    n_chunks = block_rows // chunk_rows        # static
    r = chunk_rows // SUBLANE                  # static

    def _load(row0):
        x = x_ref[pl.ds(row0, chunk_rows), :].astype(jnp.float32)
        t = t_ref[pl.ds(row0, chunk_rows), :].astype(jnp.float32)
        return x, t

    def _accum(s, t):
        # Sublane-group adds only; the single cross-lane reduce happens once
        # on the tiny (cores, 8, 128) partials in the wrapper.
        st_ref[...] += (s * t).reshape(r, SUBLANE, LANE).sum(axis=0)
        spt_ref[...] += (s + t).reshape(r, SUBLANE, LANE).sum(axis=0)

    in_range = block_idx < n_blocks                 # skip duplicate clamped blocks
    full = (row_base + block_rows) <= rows          # no garbage rows in this block

    @pl.when(jnp.logical_and(in_range, full))
    def _fast():
        @pl.loop(0, n_chunks)
        def _(ci):
            row0 = pl.multiple_of(ci * chunk_rows, SUBLANE)
            x, t = _load(row0)
            _accum(jax.nn.sigmoid(x), t)

    @pl.when(jnp.logical_and(in_range, jnp.logical_not(full)))
    def _masked():
        # At most one (edge) block per core: rows past `rows` hold garbage
        # from the partial DMA and are masked out; chunks fully past the valid
        # range are skipped entirely.
        @pl.loop(0, n_chunks)
        def _(ci):
            row0 = pl.multiple_of(ci * chunk_rows, SUBLANE)

            @pl.when(row_base + row0 < rows)
            def _():
                x, t = _load(row0)
                row = lax.broadcasted_iota(jnp.int32, (chunk_rows, LANE), 0)
                valid = (row_base + row0 + row) < rows
                s = jnp.where(valid, jax.nn.sigmoid(x), 0.0)
                t = jnp.where(valid, t, 0.0)
                _accum(s, t)


def dice_loss(inputs, targets, smooth=1.0):
    x = inputs.reshape(-1)    # free bitcast; dtypes stay native, cast in-kernel
    t = targets.reshape(-1)
    n = x.shape[0]

    # Main body = largest prefix that is a whole number of 128-lane rows (and
    # at least one (8,128) tile); the remainder (< 1024 elements) is folded in
    # with plain JAX below.  No full-array pad is ever made.
    rows = n // LANE
    if rows < SUBLANE:
        rows = 0
    n_main = rows * LANE

    inter = jnp.float32(0.0)
    s_plus_t = jnp.float32(0.0)

    if rows > 0:
        if n_main == n:
            x2 = x.reshape(rows, LANE)            # zero-copy
            t2 = t.reshape(rows, LANE)
        else:
            # TODO(synk): this prefix slice is one extra copy of the aligned
            # part; only taken when numel is not a multiple of 128.
            x2 = x[:n_main].reshape(rows, LANE)
            t2 = t[:n_main].reshape(rows, LANE)

        if rows >= CHUNK_ROWS:
            chunk_rows = CHUNK_ROWS
            block_rows = min(MAX_BLOCK_ROWS, (rows // CHUNK_ROWS) * CHUNK_ROWS)
        else:
            block_rows = (rows // SUBLANE) * SUBLANE
            chunk_rows = block_rows

        n_blocks = pl.cdiv(rows, block_rows)
        num_cores = min(_num_cores_for_split(), n_blocks)
        steps_per_core = pl.cdiv(n_blocks, num_cores)

        def in_map(c, j):
            # Clamp so over-allocated (core, step) slots never DMA out of
            # bounds; their contribution is skipped in-kernel via `in_range`.
            return (jnp.minimum(c * steps_per_core + j, n_blocks - 1), 0)

        def out_map(c, j):
            return (c, 0, 0)

        kernel = functools.partial(
            _dice_partial_kernel,
            rows=rows, block_rows=block_rows, chunk_rows=chunk_rows,
            steps_per_core=steps_per_core, n_blocks=n_blocks)

        part = jax.ShapeDtypeStruct((num_cores, SUBLANE, LANE), jnp.float32)
        st_p, spt_p = pl.pallas_call(
            kernel,
            out_shape=(part, part),
            grid=(num_cores, steps_per_core),
            in_specs=[pl.BlockSpec((block_rows, LANE), in_map),
                      pl.BlockSpec((block_rows, LANE), in_map)],
            out_specs=(pl.BlockSpec((None, SUBLANE, LANE), out_map),
                       pl.BlockSpec((None, SUBLANE, LANE), out_map)),
            compiler_params=pltpu.CompilerParams(
                dimension_semantics=("parallel", "arbitrary"),
                vmem_limit_bytes=VMEM_LIMIT_BYTES),
        )(x2, t2)

        inter = inter + jnp.sum(st_p)
        s_plus_t = s_plus_t + jnp.sum(spt_p)

    if n_main < n:
        # < 1024 leftover elements (or a tiny input): plain JAX, negligible.
        x_tail = x[n_main:].astype(jnp.float32)
        t_tail = t[n_main:].astype(jnp.float32)
        s_tail = jax.nn.sigmoid(x_tail)
        inter = inter + jnp.sum(s_tail * t_tail)
        s_plus_t = s_plus_t + jnp.sum(s_tail) + jnp.sum(t_tail)

    dice = (2.0 * inter + smooth) / (s_plus_t + smooth)
    return 1.0 - dice


def dice_loss_ref(inputs, targets, smooth=1.0):
    s = jax.nn.sigmoid(inputs.reshape(-1).astype(jnp.float32))
    t = targets.reshape(-1).astype(jnp.float32)
    inter = jnp.sum(s * t)
    dice = (2.0 * inter + smooth) / (jnp.sum(s) + jnp.sum(t) + smooth)
    return 1.0 - dice


if __name__ == "__main__":
    key = jax.random.PRNGKey(0)
    k1, k2, k3, k4 = jax.random.split(key, 4)

    # NCHW logits + binary targets, aligned case (2*4*16*16 = 2048 elements):
    # fully zero-copy path.
    inputs = jax.random.normal(k1, (2, 4, 16, 16), dtype=jnp.float32)
    targets = (jax.random.uniform(k2, (2, 4, 16, 16)) > 0.5).astype(jnp.float32)
    out = jax.block_until_ready(dice_loss(inputs, targets, smooth=1.0))
    ref = dice_loss_ref(inputs, targets, smooth=1.0)
    assert jnp.allclose(out, ref, atol=1e-5, rtol=1e-5), (out, ref)

    # Ragged case (2*3*15*17 = 1530 elements): exercises the in-kernel edge
    # mask plus the plain-JAX tail (no jnp.pad anywhere).
    inputs2 = jax.random.normal(k3, (2, 3, 15, 17), dtype=jnp.float32)
    targets2 = (jax.random.uniform(k4, (2, 3, 15, 17)) > 0.5).astype(jnp.float32)
    out2 = jax.block_until_ready(dice_loss(inputs2, targets2, smooth=1.0))
    ref2 = dice_loss_ref(inputs2, targets2, smooth=1.0)
    assert jnp.allclose(out2, ref2, atol=1e-5, rtol=1e-5), (out2, ref2)

    print("KERNEL_OK")
</pallas_src>

<mosaic_0001>
module attributes {stable_mosaic.version = 11 : i64} {
  func.func @_dice_partial_kernel(%arg0: i32, %arg1: i32, %arg2: memref<16x128xf32, #tpu.memory_space<vmem>>, %arg3: memref<16x128xf32, #tpu.memory_space<vmem>>, %arg4: memref<1x8x128xf32, #tpu.memory_space<vmem>>, %arg5: memref<1x8x128xf32, #tpu.memory_space<vmem>>) attributes {dimension_semantics = [#tpu.dimension_semantics<parallel>, #tpu.dimension_semantics<arbitrary>], iteration_bounds = array<i64: 1, 1>, scalar_prefetch = 0 : i64, scratch_operands = 0 : i64, tpu.core_type = #tpu.core_type<tc>, window_params = [{transform_indices = @transform_0, window_bounds = array<i64: 16, 128>}, {transform_indices = @transform_1, window_bounds = array<i64: 16, 128>}, {transform_indices = @transform_2, window_bounds = array<i64: 1, 8, 128>}, {transform_indices = @transform_3, window_bounds = array<i64: 1, 8, 128>}]} {
    %c0_i32 = arith.constant 0 : i32
    %0 = arith.cmpi eq, %arg1, %c0_i32 : i32
    %1 = arith.extui %0 : i1 to i32
    %c0_i32_0 = arith.constant 0 : i32
    %2 = arith.cmpi ne, %1, %c0_i32_0 : i32
    scf.if %2 {
      %cst = arith.constant 0.000000e+00 : f32
      %16 = vector.broadcast %cst : f32 to vector<8x128xf32>
      %c0 = arith.constant 0 : index
      %c0_6 = arith.constant 0 : index
      %c0_7 = arith.constant 0 : index
      %17 = vector.load %arg4[%c0, %c0_6, %c0_7] : memref<1x8x128xf32, #tpu.memory_space<vmem>>, vector<1x8x128xf32>
      %18 = vector.shape_cast %17 : vector<1x8x128xf32> to vector<8x128xf32>
      %19 = vector.shape_cast %16 : vector<8x128xf32> to vector<1x8x128xf32>
      tpu.vector_store %arg4[%c0, %c0_6, %c0_7], %19 {strides = array<i32>} : memref<1x8x128xf32, #tpu.memory_space<vmem>>, vector<1x8x128xf32>,
      %cst_8 = arith.constant 0.000000e+00 : f32
      %20 = vector.broadcast %cst_8 : f32 to vector<8x128xf32>
      %c0_9 = arith.constant 0 : index
      %c0_10 = arith.constant 0 : index
      %c0_11 = arith.constant 0 : index
      %21 = vector.load %arg5[%c0_9, %c0_10, %c0_11] : memref<1x8x128xf32, #tpu.memory_space<vmem>>, vector<1x8x128xf32>
      %22 = vector.shape_cast %21 : vector<1x8x128xf32> to vector<8x128xf32>
      %23 = vector.shape_cast %20 : vector<8x128xf32> to vector<1x8x128xf32>
      tpu.vector_store %arg5[%c0_9, %c0_10, %c0_11], %23 {strides = array<i32>} : memref<1x8x128xf32, #tpu.memory_space<vmem>>, vector<1x8x128xf32>,
    } else {
    }
    %c1_i32 = arith.constant 1 : i32
    %3 = arith.muli %arg0, %c1_i32 : i32
    %4 = arith.addi %3, %arg1 : i32
    %c16_i32 = arith.constant 16 : i32
    %5 = arith.muli %4, %c16_i32 : i32
    %c1_i32_1 = arith.constant 1 : i32
    %6 = arith.cmpi slt, %4, %c1_i32_1 : i32
    %c16_i32_2 = arith.constant 16 : i32
    %7 = arith.addi %5, %c16_i32_2 : i32
    %c16_i32_3 = arith.constant 16 : i32
    %8 = arith.cmpi sle, %7, %c16_i32_3 : i32
    %9 = arith.andi %6, %8 : i1
    %10 = arith.extui %9 : i1 to i32
    %c0_i32_4 = arith.constant 0 : i32
    %11 = arith.cmpi ne, %10, %c0_i32_4 : i32
    scf.if %11 {
      %c0_i32_6 = arith.constant 0 : i32
      %c1_i32_7 = arith.constant 1 : i32
      %16 = arith.muli %c0_i32_6, %c1_i32_7 : i32
      %c0_i32_8 = arith.constant 0 : i32
      %17 = arith.addi %c0_i32_8, %16 : i32
      %c16_i32_9 = arith.constant 16 : i32
      %18 = arith.muli %17, %c16_i32_9 : i32
      %19 = tpu.assume_multiple %18, 8 : i32
      %20 = arith.index_cast %19 : i32 to index
      %c0 = arith.constant 0 : index
      %21 = vector.load %arg2[%20, %c0] : memref<16x128xf32, #tpu.memory_space<vmem>>, vector<16x128xf32>
      %22 = arith.index_cast %19 : i32 to index
      %c0_10 = arith.constant 0 : index
      %23 = vector.load %arg3[%22, %c0_10] : memref<16x128xf32, #tpu.memory_space<vmem>>, vector<16x128xf32>
      %24 = arith.negf %21 : vector<16x128xf32>
      %25 = math.exp %24 : vector<16x128xf32>
      %cst = arith.constant 1.000000e+00 : f32
      %26 = vector.broadcast %cst : f32 to vector<16x128xf32>
      %27 = arith.addf %26, %25 : vector<16x128xf32>
      %28 = arith.divf %26, %27 : vector<16x128xf32>
      %c0_11 = arith.constant 0 : index
      %c0_12 = arith.constant 0 : index
      %c0_13 = arith.constant 0 : index
      %29 = vector.load %arg4[%c0_11, %c0_12, %c0_13] : memref<1x8x128xf32, #tpu.memory_space<vmem>>, vector<1x8x128xf32>
      %30 = vector.shape_cast %29 : vector<1x8x128xf32> to vector<8x128xf32>
      %31 = arith.mulf %28, %23 : vector<16x128xf32>
      %32 = vector.shape_cast %31 : vector<16x128xf32> to vector<2x8x128xf32>
      %cst_14 = arith.constant dense<0.000000e+00> : vector<8x128xf32>
      %33 = vector.multi_reduction <add>, %32, %cst_14 [0] : vector<2x8x128xf32> to vector<8x128xf32>
      %34 = arith.addf %30, %33 : vector<8x128xf32>
      %c0_15 = arith.constant 0 : index
      %c0_16 = arith.constant 0 : index
      %c0_17 = arith.constant 0 : index
      %35 = vector.load %arg4[%c0_15, %c0_16, %c0_17] : memref<1x8x128xf32, #tpu.memory_space<vmem>>, vector<1x8x128xf32>
      %36 = vector.shape_cast %35 : vector<1x8x128xf32> to vector<8x128xf32>
      %37 = vector.shape_cast %34 : vector<8x128xf32> to vector<1x8x128xf32>
      tpu.vector_store %arg4[%c0_15, %c0_16, %c0_17], %37 {strides = array<i32>} : memref<1x8x128xf32, #tpu.memory_space<vmem>>, vector<1x8x128xf32>,
      %c0_18 = arith.constant 0 : index
      %c0_19 = arith.constant 0 : index
      %c0_20 = arith.constant 0 : index
      %38 = vector.load %arg5[%c0_18, %c0_19, %c0_20] : memref<1x8x128xf32, #tpu.memory_space<vmem>>, vector<1x8x128xf32>
      %39 = vector.shape_cast %38 : vector<1x8x128xf32> to vector<8x128xf32>
      %40 = arith.addf %28, %23 : vector<16x128xf32>
      %41 = vector.shape_cast %40 : vector<16x128xf32> to vector<2x8x128xf32>
      %cst_21 = arith.constant dense<0.000000e+00> : vector<8x128xf32>
      %42 = vector.multi_reduction <add>, %41, %cst_21 [0] : vector<2x8x128xf32> to vector<8x128xf32>
      %43 = arith.addf %39, %42 : vector<8x128xf32>
      %c0_22 = arith.constant 0 : index
      %c0_23 = arith.constant 0 : index
      %c0_24 = arith.constant 0 : index
      %44 = vector.load %arg5[%c0_22, %c0_23, %c0_24] : memref<1x8x128xf32, #tpu.memory_space<vmem>>, vector<1x8x128xf32>
      %45 = vector.shape_cast %44 : vector<1x8x128xf32> to vector<8x128xf32>
      %46 = vector.shape_cast %43 : vector<8x128xf32> to vector<1x8x128xf32>
      tpu.vector_store %arg5[%c0_22, %c0_23, %c0_24], %46 {strides = array<i32>} : memref<1x8x128xf32, #tpu.memory_space<vmem>>, vector<1x8x128xf32>,
      %c1_i32_25 = arith.constant 1 : i32
    } else {
    }
    %true = arith.constant true
    %12 = arith.xori %8, %true : i1
    %13 = arith.andi %6, %12 : i1
    %14 = arith.extui %13 : i1 to i32
    %c0_i32_5 = arith.constant 0 : i32
    %15 = arith.cmpi ne, %14, %c0_i32_5 : i32
    scf.if %15 {
      %c0_i32_6 = arith.constant 0 : i32
      %c1_i32_7 = arith.constant 1 : i32
      %16 = arith.muli %c0_i32_6, %c1_i32_7 : i32
      %c0_i32_8 = arith.constant 0 : i32
      %17 = arith.addi %c0_i32_8, %16 : i32
      %c16_i32_9 = arith.constant 16 : i32
      %18 = arith.muli %17, %c16_i32_9 : i32
      %19 = tpu.assume_multiple %18, 8 : i32
      %20 = arith.addi %5, %19 : i32
      %c16_i32_10 = arith.constant 16 : i32
      %21 = arith.cmpi slt, %20, %c16_i32_10 : i32
      %22 = arith.extui %21 : i1 to i32
      %c0_i32_11 = arith.constant 0 : i32
      %23 = arith.cmpi ne, %22, %c0_i32_11 : i32
      scf.if %23 {
        %24 = arith.index_cast %19 : i32 to index
        %c0 = arith.constant 0 : index
        %25 = vector.load %arg2[%24, %c0] : memref<16x128xf32, #tpu.memory_space<vmem>>, vector<16x128xf32>
        %26 = arith.index_cast %19 : i32 to index
        %c0_13 = arith.constant 0 : index
        %27 = vector.load %arg3[%26, %c0_13] : memref<16x128xf32, #tpu.memory_space<vmem>>, vector<16x128xf32>
        %28 = tpu.iota {dimensions = array<i32: 0>} : vector<16x128xi32>
        %29 = arith.addi %5, %19 : i32
        %30 = vector.broadcast %29 : i32 to vector<16x128xi32>
        %31 = arith.addi %30, %28 : vector<16x128xi32>
        %c16_i32_14 = arith.constant 16 : i32
        %32 = vector.broadcast %c16_i32_14 : i32 to vector<16x128xi32>
        %33 = arith.cmpi slt, %31, %32 : vector<16x128xi32>
        %34 = arith.negf %25 : vector<16x128xf32>
        %35 = math.exp %34 : vector<16x128xf32>
        %cst = arith.constant 1.000000e+00 : f32
        %36 = vector.broadcast %cst : f32 to vector<16x128xf32>
        %37 = arith.addf %36, %35 : vector<16x128xf32>
        %38 = arith.divf %36, %37 : vector<16x128xf32>
        %cst_15 = arith.constant 0.000000e+00 : f32
        %39 = vector.broadcast %cst_15 : f32 to vector<16x128xf32>
        %40 = arith.select %33, %38, %39 : vector<16x128xi1>, vector<16x128xf32>
        %cst_16 = arith.constant 0.000000e+00 : f32
        %41 = vector.broadcast %cst_16 : f32 to vector<16x128xf32>
        %42 = arith.select %33, %27, %41 : vector<16x128xi1>, vector<16x128xf32>
        %c0_17 = arith.constant 0 : index
        %c0_18 = arith.constant 0 : index
        %c0_19 = arith.constant 0 : index
        %43 = vector.load %arg4[%c0_17, %c0_18, %c0_19] : memref<1x8x128xf32, #tpu.memory_space<vmem>>, vector<1x8x128xf32>
        %44 = vector.shape_cast %43 : vector<1x8x128xf32> to vector<8x128xf32>
        %45 = arith.mulf %40, %42 : vector<16x128xf32>
        %46 = vector.shape_cast %45 : vector<16x128xf32> to vector<2x8x128xf32>
        %cst_20 = arith.constant dense<0.000000e+00> : vector<8x128xf32>
        %47 = vector.multi_reduction <add>, %46, %cst_20 [0] : vector<2x8x128xf32> to vector<8x128xf32>
        %48 = arith.addf %44, %47 : vector<8x128xf32>
        %c0_21 = arith.constant 0 : index
        %c0_22 = arith.constant 0 : index
        %c0_23 = arith.constant 0 : index
        %49 = vector.load %arg4[%c0_21, %c0_22, %c0_23] : memref<1x8x128xf32, #tpu.memory_space<vmem>>, vector<1x8x128xf32>
        %50 = vector.shape_cast %49 : vector<1x8x128xf32> to vector<8x128xf32>
        %51 = vector.shape_cast %48 : vector<8x128xf32> to vector<1x8x128xf32>
        tpu.vector_store %arg4[%c0_21, %c0_22, %c0_23], %51 {strides = array<i32>} : memref<1x8x128xf32, #tpu.memory_space<vmem>>, vector<1x8x128xf32>,
        %c0_24 = arith.constant 0 : index
        %c0_25 = arith.constant 0 : index
        %c0_26 = arith.constant 0 : index
        %52 = vector.load %arg5[%c0_24, %c0_25, %c0_26] : memref<1x8x128xf32, #tpu.memory_space<vmem>>, vector<1x8x128xf32>
        %53 = vector.shape_cast %52 : vector<1x8x128xf32> to vector<8x128xf32>
        %54 = arith.addf %40, %42 : vector<16x128xf32>
        %55 = vector.shape_cast %54 : vector<16x128xf32> to vector<2x8x128xf32>
        %cst_27 = arith.constant dense<0.000000e+00> : vector<8x128xf32>
        %56 = vector.multi_reduction <add>, %55, %cst_27 [0] : vector<2x8x128xf32> to vector<8x128xf32>
        %57 = arith.addf %53, %56 : vector<8x128xf32>
        %c0_28 = arith.constant 0 : index
        %c0_29 = arith.constant 0 : index
        %c0_30 = arith.constant 0 : index
        %58 = vector.load %arg5[%c0_28, %c0_29, %c0_30] : memref<1x8x128xf32, #tpu.memory_space<vmem>>, vector<1x8x128xf32>
        %59 = vector.shape_cast %58 : vector<1x8x128xf32> to vector<8x128xf32>
        %60 = vector.shape_cast %57 : vector<8x128xf32> to vector<1x8x128xf32>
        tpu.vector_store %arg5[%c0_28, %c0_29, %c0_30], %60 {strides = array<i32>} : memref<1x8x128xf32, #tpu.memory_space<vmem>>, vector<1x8x128xf32>,
      } else {
      }
      %c1_i32_12 = arith.constant 1 : i32
    } else {
    }
    return
  }
  func.func @transform_0(%arg0: i32, %arg1: i32) -> (i32, i32) {
    %c1_i32 = arith.constant 1 : i32
    %0 = arith.muli %arg0, %c1_i32 : i32
    %1 = arith.addi %0, %arg1 : i32
    %c0_i32 = arith.constant 0 : i32
    %2 = arith.minsi %1, %c0_i32 : i32
    %c0_i32_0 = arith.constant 0 : i32
    %c0_i32_1 = arith.constant 0 : i32
    return %2, %c0_i32_0 : i32, i32
  }
  func.func @transform_1(%arg0: i32, %arg1: i32) -> (i32, i32) {
    %c1_i32 = arith.constant 1 : i32
    %0 = arith.muli %arg0, %c1_i32 : i32
    %1 = arith.addi %0, %arg1 : i32
    %c0_i32 = arith.constant 0 : i32
    %2 = arith.minsi %1, %c0_i32 : i32
    %c0_i32_0 = arith.constant 0 : i32
    %c0_i32_1 = arith.constant 0 : i32
    return %2, %c0_i32_0 : i32, i32
  }
  func.func @transform_2(%arg0: i32, %arg1: i32) -> (i32, i32, i32) {
    %c0_i32 = arith.constant 0 : i32
    %c0_i32_0 = arith.constant 0 : i32
    %c0_i32_1 = arith.constant 0 : i32
    return %arg0, %c0_i32, %c0_i32_0 : i32, i32, i32
  }
  func.func @transform_3(%arg0: i32, %arg1: i32) -> (i32, i32, i32) {
    %c0_i32 = arith.constant 0 : i32
    %c0_i32_0 = arith.constant 0 : i32
    %c0_i32_1 = arith.constant 0 : i32
    return %arg0, %c0_i32, %c0_i32_0 : i32, i32, i32
  }
}

</mosaic_0001>

<llo_original>
// kernel: tpu_custom_call.1
$region0: #{tpu_custom_call.1}
  #allocation0 [shape = 'u32[]', space=smem, size = 0x4, offset = 0x4, fixed_abs, tag = 'smem constant byte address 0x4 - core index']
  #allocation1 [shape = 'u32[144,128]{1,0:T(1,128)}', space=vmem, size = 0x12000, scoped, tag = 'internal scratch']
  %s0 = inlined_call_operand.hbm [shape: f32[16,128], index: 0, kind: input, shape index: {}]
  %s1 = inlined_call_operand.hbm [shape: f32[16,128], index: 1, kind: input, shape index: {}]
  %s2 = inlined_call_operand.hbm [shape: f32[1,8,128], index: 2, kind: output, shape index: {0}]
  %s3 = inlined_call_operand.hbm [shape: f32[1,8,128], index: 3, kind: output, shape index: {1}]
  %4 = xla_tuple %s2, %s3
  %s5 = sld [smem:[#allocation0]]
  $region50: #{tpu_custom_call.1} parent=0
    _
  %s7 = ssub.s32 1, %s5
  %s8 = scalar_select 0, %s7, %s5
  $region1: #{tpu_custom_call.1} parent=0
    #allocation2 [shape = 'u8[8192]{0}', space=vmem, size = 0x2000, scoped, tag = 'input window, operand 0, single buffered']
    #allocation3 [shape = 's32[1]{0}', space=sflag, size = 0x4, scoped, tag = 'scoped memory for tpu_custom_call.1']
    #allocation4 [shape = 's32[1]{0}', space=sflag, size = 0x4, scoped, tag = 'scoped memory for tpu_custom_call.1']
    #allocation5 [shape = 'u8[8192]{0}', space=vmem, size = 0x2000, scoped, tag = 'input window, operand 1, single buffered']
    #allocation6 [shape = 's32[1]{0}', space=sflag, size = 0x4, scoped, tag = 'scoped memory for tpu_custom_call.1']
    #allocation7 [shape = 'u8[4096]{0}', space=vmem, size = 0x1000, scoped, tag = 'output window, operand 0, single buffered']
    #allocation8 [shape = 'u8[4096]{0}', space=vmem, size = 0x1000, scoped, tag = 'output window, operand 1, single buffered']
    #allocation9 [shape = 's32[1]{0}', space=sflag, size = 0x4, scoped, tag = 'scoped memory for tpu_custom_call.1']
    %9 = vsyncpa [#allocation3], 0
    %10 = vsyncpa [#allocation6], 0
    %11 = vsyncpa [#allocation4], 0
    %12 = vsyncpa [#allocation9], 0
    // Predicated region
    $region2: #{tpu_custom_call.1} parent=1 // pred_check
      _
    $region3: #{tpu_custom_call.1} parent=1 // pred_check_branch
      %14 = sbr.rel (0) target = $region5
    $region4: #{tpu_custom_call.1} parent=1 // pred_region
      %s15 = sadd.s32 0, 0
      %p16 = scmp.lt.s32.totalorder %s15, 0
      %s17 = scalar_select %p16, %s15, 0
      %s18 = smul.u32 2, %s17
      %s20 = ssub.s32 256, 256
      %21 = vsyncadd [#allocation3], %s20
      %s22 = smul.addr %s18, 128
      %s23 = scalar_lea.hbm %s0, %s22
      %s24 = sshll.u32 [#allocation2], 4
      %s25 = int_to_ptr.vmem [resolvable:$true] %s24
      %30 = dma.hbm_to_vmem [thread:$0]  %s23, 256, %s25, [#allocation3], 128, 128, 8
    $region5: #{tpu_custom_call.1} parent=1 // pred_fallthru
      _
    // Predicated region
    $region6: #{tpu_custom_call.1} parent=1 // pred_check
      _
    $region7: #{tpu_custom_call.1} parent=1 // pred_check_branch
      %32 = sbr.rel (0) target = $region9
    $region8: #{tpu_custom_call.1} parent=1 // pred_region
      %s33 = sadd.s32 0, 0
      %p34 = scmp.lt.s32.totalorder %s33, 0
      %s35 = scalar_select %p34, %s33, 0
      %s36 = smul.u32 2, %s35
      %s38 = ssub.s32 256, 256
      %39 = vsyncadd [#allocation6], %s38
      %s40 = smul.addr %s36, 128
      %s41 = scalar_lea.hbm %s1, %s40
      %s42 = sshll.u32 [#allocation5], 4
      %s43 = int_to_ptr.vmem [resolvable:$true] %s42
      %48 = dma.hbm_to_vmem [thread:$0]  %s41, 256, %s43, [#allocation6], 128, 128, 8
    $region9: #{tpu_custom_call.1} parent=1 // pred_fallthru
      _
    // Predicated region
    $region10: #{tpu_custom_call.1} parent=1 // pred_check
      _
    $region11: #{tpu_custom_call.1} parent=1 // pred_check_branch
      %50 = sbr.rel (0) target = $region13
    $region12: #{tpu_custom_call.1} parent=1 // pred_region
      %51 = dma.done [#allocation3], 256
    $region13: #{tpu_custom_call.1} parent=1 // pred_fallthru
      _
    // Predicated region
    $region14: #{tpu_custom_call.1} parent=1 // pred_check
      _
    $region15: #{tpu_custom_call.1} parent=1 // pred_check_branch
      %53 = sbr.rel (0) target = $region17
    $region16: #{tpu_custom_call.1} parent=1 // pred_region
      %54 = dma.done [#allocation6], 256
    $region17: #{tpu_custom_call.1} parent=1 // pred_fallthru
      _
    %s55 = sadd.s32 0, 0
    %p56 = scmp.lt.s32.totalorder %s55, 0
    %s57 = scalar_select %p56, %s55, 0
    %s58 = smul.u32 2, %s57
    %s59 = sadd.s32 0, 0
    %p60 = scmp.lt.s32.totalorder %s59, 0
    %s61 = scalar_select %p60, %s59, 0
    %s62 = smul.u32 2, %s61
    %p63 = scmp.eq.s32.totalorder 0, 0
    // Predicated region
    $region18: #{tpu_custom_call.1} parent=1 // pred_check
      %p64 = pneg %p63
    $region19: #{tpu_custom_call.1} parent=1 // pred_check_branch
      %66 = sbr.rel (%p64) target = $region21
    $region20: #{tpu_custom_call.1} parent=1 // pred_region
      %67 = vst [vmem:[#allocation7] sm:$0xff] 0.0
      %68 = vst [vmem:[#allocation8] sm:$0xff] 0.0
    $region21: #{tpu_custom_call.1} parent=1 // pred_fallthru
      _
    %s69 = sadd.s32 0, 0
    %s70 = smul.u32 %s69, 16
    %p71 = scmp.lt.s32.totalorder %s69, 1
    %s72 = sadd.s32 %s70, 16
    %p73 = scmp.le.s32.totalorder %s72, 16
    %p74 = pnand %p71, %p73
    %p75 = pneg %p74
    // Predicated region
    $region22: #{tpu_custom_call.1} parent=1 // pred_check
      _
    $region23: #{tpu_custom_call.1} parent=1 // pred_check_branch
      %77 = sbr.rel (%p74) target = $region25
    $region24: #{tpu_custom_call.1} parent=1 // pred_region
      %v78 = vld [vmem:[#allocation2] sm:$0xff]
      %v79 = vld [vmem:[#allocation2 + $0x8] sm:$0xff]
      %v80 = vld [vmem:[#allocation5] sm:$0xff]
      %v81 = vld [vmem:[#allocation5 + $0x8] sm:$0xff]
      %v82 = vxor.u32 %v78, 2147483648
      %v83 = vxor.u32 %v79, 2147483648
      %v84 = vmul.f32 %v82, 1.442695
      %v85 = vpow.pop %v84
      %v86 = vmul.f32 %v83, 1.442695
      %v87 = vpow.pop %v86
      %v88 = vadd.f32 %v85, 1.0
      %v89 = vadd.f32 %v87, 1.0
      %v90 = vrcp.pop %v88
      %v91 = vmul.f32 1.0, %v90
      %v92 = vrcp.pop %v89
      %v93 = vmul.f32 1.0, %v92
      %v94 = vld [vmem:[#allocation7] sm:$0xff]
      %v95 = vmul.f32 %v91, %v80
      %v96 = vmul.f32 %v93, %v81
      %v97 = vadd.f32 %v95, %v96
      %v98 = vadd.f32 %v94, %v97
      %99 = vst [vmem:[#allocation7] sm:$0xff] %v98
      %v100 = vld [vmem:[#allocation8] sm:$0xff]
      %v101 = vadd.f32 %v91, %v80
      %v102 = vadd.f32 %v93, %v81
      %v103 = vadd.f32 %v101, %v102
      %v104 = vadd.f32 %v100, %v103
      %105 = vst [vmem:[#allocation8] sm:$0xff] %v104
    $region25: #{tpu_custom_call.1} parent=1 // pred_fallthru
      _
    %p106 = scmp.gt.s32.totalorder %s72, 16
    %p107 = pnand %p71, %p106
    %p108 = pneg %p107
    // Predicated region
    $region26: #{tpu_custom_call.1} parent=1 // pred_check
      _
    $region27: #{tpu_custom_call.1} parent=1 // pred_check_branch
      %110 = sbr.rel (%p107) target = $region29
    $region28: #{tpu_custom_call.1} parent=1 // pred_region
      %s111 = sadd.s32 %s70, 0
      %p112 = scmp.lt.s32.totalorder %s111, 16
      // Predicated region
      $region30: #{tpu_custom_call.1} parent=28 // pred_check
        %p113 = pneg %p112
      $region31: #{tpu_custom_call.1} parent=28 // pred_check_branch
        %115 = sbr.rel (%p113) target = $region33
      $region32: #{tpu_custom_call.1} parent=28 // pred_region
        %v116 = vld [vmem:[#allocation2] sm:$0xff]
        %v117 = vld [vmem:[#allocation2 + $0x8] sm:$0xff]
        %v118 = vld [vmem:[#allocation5] sm:$0xff]
        %v119 = vld [vmem:[#allocation5 + $0x8] sm:$0xff]
        %v120 = vlaneseq
        %v121 = vshrl.u32 %v120, 7
        %v122 = vadd.s32 %v121, 8
        %v123 = vstv %s111
        %v124 = vadd.s32 %v123, %v121
        %v125 = vadd.s32 %v123, %v122
        %vm126 = vcmp.lt.s32.totalorder %v124, 16
        %vm127 = vcmp.lt.s32.totalorder %v125, 16
        %v128 = vxor.u32 %v116, 2147483648
        %v129 = vxor.u32 %v117, 2147483648
        %v130 = vmul.f32 %v128, 1.442695
        %v131 = vpow.pop %v130
        %v132 = vmul.f32 %v129, 1.442695
        %v133 = vpow.pop %v132
        %v134 = vadd.f32 %v131, 1.0
        %v135 = vadd.f32 %v133, 1.0
        %v136 = vrcp.pop %v134
        %v137 = vmul.f32 1.0, %v136
        %v138 = vrcp.pop %v135
        %v139 = vmul.f32 1.0, %v138
        %v140 = vsel %vm126, %v137, 0.0
        %v141 = vsel %vm127, %v139, 0.0
        %v142 = vsel %vm126, %v118, 0.0
        %v143 = vsel %vm127, %v119, 0.0
        %v144 = vld [vmem:[#allocation7] sm:$0xff]
        %v145 = vmul.f32 %v140, %v142
        %v146 = vmul.f32 %v141, %v143
        %v147 = vadd.f32 %v145, %v146
        %v148 = vadd.f32 %v144, %v147
        %149 = vst [vmem:[#allocation7] sm:$0xff] %v148
        %v150 = vld [vmem:[#allocation8] sm:$0xff]
        %v151 = vadd.f32 %v140, %v142
        %v152 = vadd.f32 %v141, %v143
        %v153 = vadd.f32 %v151, %v152
        %v154 = vadd.f32 %v150, %v153
        %155 = vst [vmem:[#allocation8] sm:$0xff] %v154
      $region33: #{tpu_custom_call.1} parent=28 // pred_fallthru
        _
    $region29: #{tpu_custom_call.1} parent=1 // pred_fallthru
      _
    // Predicated region
    $region34: #{tpu_custom_call.1} parent=1 // pred_check
      _
    $region35: #{tpu_custom_call.1} parent=1 // pred_check_branch
      %157 = sbr.rel (0) target = $region37
    $region36: #{tpu_custom_call.1} parent=1 // pred_region
      %s159 = ssub.s32 128, 128
      %160 = vsyncadd [#allocation4], %s159
      %s162 = sshll.u32 [#allocation7], 4
      %s163 = int_to_ptr.vmem [resolvable:$true] %s162
      %165 = dma.vmem_to_hbm [thread:$0]  %s163, 128, %s2, [#allocation4]
    $region37: #{tpu_custom_call.1} parent=1 // pred_fallthru
      _
    // Predicated region
    $region38: #{tpu_custom_call.1} parent=1 // pred_check
      _
    $region39: #{tpu_custom_call.1} parent=1 // pred_check_branch
      %167 = sbr.rel (0) target = $region41
    $region40: #{tpu_custom_call.1} parent=1 // pred_region
      %s169 = ssub.s32 128, 128
      %170 = vsyncadd [#allocation9], %s169
      %s172 = sshll.u32 [#allocation8], 4
      %s173 = int_to_ptr.vmem [resolvable:$true] %s172
      %175 = dma.vmem_to_hbm [thread:$0]  %s173, 128, %s3, [#allocation9]
    $region41: #{tpu_custom_call.1} parent=1 // pred_fallthru
      _
    // Predicated region
    $region42: #{tpu_custom_call.1} parent=1 // pred_check
      _
    $region43: #{tpu_custom_call.1} parent=1 // pred_check_branch
      %177 = sbr.rel (0) target = $region45
    $region44: #{tpu_custom_call.1} parent=1 // pred_region
      %178 = dma.done [#allocation4], 128
    $region45: #{tpu_custom_call.1} parent=1 // pred_fallthru
      _
    // Predicated region
    $region46: #{tpu_custom_call.1} parent=1 // pred_check
      _
    $region47: #{tpu_custom_call.1} parent=1 // pred_check_branch
      %180 = sbr.rel (0) target = $region49
    $region48: #{tpu_custom_call.1} parent=1 // pred_region
      %181 = dma.done [#allocation9], 128
    $region49: #{tpu_custom_call.1} parent=1 // pred_fallthru
      _
    %182 = vsyncpa [#allocation3], 1
    %183 = vsyncpa [#allocation6], 1
    %184 = vsyncpa [#allocation4], 1
    %185 = vsyncpa [#allocation9], 1

</llo_original>
